<compile_context>
chip_gen: v6e
topology: v6e:2x2x1
jax: 0.10.0
libtpu: 0.0.40
codegen_flags: <defaults>
</compile_context>

<pallas_src>
import functools

import jax
import jax.numpy as jnp
from jax import lax
from jax.experimental import pallas as pl
from jax.experimental.pallas import tpu as pltpu

LANES = 128
SUBLANES = 8
VREG_ELEMS = SUBLANES * LANES  # 1024


def _mse_partial_kernel(x_ref, t_ref, psum_ref, acc_ref, *,
                        tile_rows, rows, blocks_per_shard, num_blocks,
                        needs_mask):
    """Per-shard sum((x - t)^2) into a vreg-sized (8,128) accumulator."""
    s = pl.program_id(0)   # shard (parallel axis -> one per TensorCore on v7x)
    j = pl.program_id(1)   # block within shard (reduction axis)

    @pl.when(j == 0)
    def _():
        acc_ref[...] = jnp.zeros_like(acc_ref)

    d = x_ref[...].astype(jnp.float32) - t_ref[...].astype(jnp.float32)
    sq = d * d

    def vreg_sum(v):
        # (tr, 128) -> (tr//8, 8, 128) -> sum over leading axis: pure VALU
        # vreg adds; the reshape does not cross an (8,128) tile boundary.
        return v.reshape(tile_rows // SUBLANES, SUBLANES, LANES).sum(axis=0)

    if needs_mask:
        # Global (unclamped) block index.  Only the last real block (partial)
        # and any clamped duplicate blocks of an uneven shard split need the
        # row mask; interior blocks take the unmasked fast path.
        b = s * blocks_per_shard + j
        is_interior = b < (num_blocks - 1)

        @pl.when(is_interior)
        def _():
            acc_ref[...] += vreg_sum(sq)

        @pl.when(jnp.logical_not(is_interior))
        def _():
            row_ids = b * tile_rows + lax.broadcasted_iota(
                jnp.int32, (tile_rows, LANES), 0)
            # Select (not multiply) so garbage/NaN in out-of-range rows of the
            # VMEM buffer cannot propagate into the sum.
            acc_ref[...] += vreg_sum(jnp.where(row_ids < rows, sq, 0.0))
    else:
        acc_ref[...] += vreg_sum(sq)

    @pl.when(j == pl.num_programs(1) - 1)
    def _():
        # Write the whole vreg-shaped partial; cross-lane reduce happens in
        # the wrapper (avoids in-kernel XLU reduce + masked 1-element store).
        psum_ref[0, :, :] = acc_ref[...]


def _default_params():
    """Per-generation (tile_rows, num_shards) defaults."""
    try:
        kind = jax.devices()[0].device_kind.lower()
    except Exception:  # pragma: no cover - defensive
        kind = ""
    if "v7" in kind:
        # 2 TCs: shard the stream; 4096 rows = 2 MiB/input block, 8 MiB
        # double-buffered -> well under the 32 MiB scoped VMEM default.
        return 4096, 2
    if "v6" in kind:
        return 2048, 1
    if "v5" in kind:
        return 2048, 1
    return 1024, 1


def content_loss(layer_input, target, *, tile_rows=None, num_shards=None):
    """Returns (layer_input, loss) matching ContentLoss.forward semantics."""
    assert layer_input.shape == target.shape, "input/target shapes must match"
    n_elems = layer_input.size

    if tile_rows is None or num_shards is None:
        d_tile, d_shards = _default_params()
        tile_rows = d_tile if tile_rows is None else tile_rows
        num_shards = d_shards if num_shards is None else num_shards

    flat_x = layer_input.reshape(-1)
    flat_t = target.reshape(-1)

    # Kernel consumes only the vreg-aligned (1024-element) prefix; the small
    # tail is summed in plain JAX (no full-array pad / copy).
    n_main = (n_elems // VREG_ELEMS) * VREG_ELEMS

    if n_main == 0:
        # Tiny input: plain JAX is both correct and faster than a launch.
        diff = flat_x.astype(jnp.float32) - flat_t.astype(jnp.float32)
        return layer_input, jnp.sum(diff * diff) / n_elems

    tail_sum = jnp.float32(0.0)
    if n_main == n_elems:
        main_x, main_t = flat_x, flat_t
    else:
        main_x = lax.slice(flat_x, (0,), (n_main,))
        main_t = lax.slice(flat_t, (0,), (n_main,))
        tx = lax.slice(flat_x, (n_main,), (n_elems,)).astype(jnp.float32)
        tt = lax.slice(flat_t, (n_main,), (n_elems,)).astype(jnp.float32)
        tail_sum = jnp.sum((tx - tt) ** 2)

    rows = n_main // LANES              # multiple of 8 by construction
    x2d = main_x.reshape(rows, LANES)
    t2d = main_t.reshape(rows, LANES)

    # Tile sizing: as large as requested, clamped to the array, multiple of 8.
    tr = min(tile_rows, rows)
    tr = max(SUBLANES, (tr // SUBLANES) * SUBLANES)
    num_blocks = -(-rows // tr)
    shards = max(1, min(num_shards, num_blocks))
    bps = -(-num_blocks // shards)                 # blocks per shard
    needs_mask = (shards * bps * tr) != rows

    def in_map(s, j):
        b = s * bps + j
        # Clamp so the DMA never walks past the array; clamped duplicates of
        # an uneven split are zero-masked in the kernel's edge path.
        return (jnp.minimum(b, num_blocks - 1), 0)

    kernel = functools.partial(
        _mse_partial_kernel, tile_rows=tr, rows=rows,
        blocks_per_shard=bps, num_blocks=num_blocks, needs_mask=needs_mask)

    itemsize = jnp.dtype(layer_input.dtype).itemsize
    cost = pl.CostEstimate(
        flops=3 * n_main,
        transcendentals=0,
        bytes_accessed=2 * n_main * itemsize + shards * VREG_ELEMS * 4)

    partials = pl.pallas_call(
        kernel,
        out_shape=jax.ShapeDtypeStruct((shards, SUBLANES, LANES), jnp.float32),
        grid_spec=pltpu.PrefetchScalarGridSpec(
            num_scalar_prefetch=0,
            grid=(shards, bps),
            in_specs=[
                pl.BlockSpec((tr, LANES), in_map),
                pl.BlockSpec((tr, LANES), in_map),
            ],
            out_specs=pl.BlockSpec((1, SUBLANES, LANES), lambda s, j: (s, 0, 0)),
            scratch_shapes=[pltpu.VMEM((SUBLANES, LANES), jnp.float32)],
        ),
        compiler_params=pltpu.CompilerParams(
            # Leading axis shards the stream across the 2 TCs on v7x; on
            # single-TC chips num_shards defaults to 1 so it is a no-op.
            # TODO(synk): verify in an xprof trace that "parallel" lands on
            # both v7x TensorCores; switch to pltpu.CORE_PARALLEL if not.
            dimension_semantics=("parallel", "arbitrary")),
        cost_estimate=cost,
    )(x2d, t2d)

    loss = (jnp.sum(partials) + tail_sum) / n_elems
    return layer_input, loss


if __name__ == "__main__":
    key = jax.random.PRNGKey(0)
    k_x, k_t = jax.random.split(key)

    # Feature-map-like shapes (NCHW), small per instructions.
    x = jax.random.normal(k_x, (2, 4, 16, 16), dtype=jnp.float32)
    # Deterministic "target" feature map F_{CL} (given at __init__ in PyTorch).
    target = jax.random.normal(k_t, (2, 4, 16, 16), dtype=jnp.float32)

    out, loss = content_loss(x, target)
    out = jax.block_until_ready(out)
    loss = jax.block_until_ready(loss)

    # Reference check (plain JAX MSE + passthrough).
    ref_loss = jnp.mean((x - target) ** 2)
    assert jnp.allclose(loss, ref_loss, rtol=1e-6, atol=1e-6), (loss, ref_loss)
    assert jnp.array_equal(out, x)

    # Extra shape exercising the partial-block / tail paths (not a multiple
    # of 1024 elements, not a multiple of 128 either).
    x2 = jax.random.normal(k_x, (3, 5, 11, 13), dtype=jnp.float32)
    t2 = jax.random.normal(k_t, (3, 5, 11, 13), dtype=jnp.float32)
    _, loss2 = content_loss(x2, t2, tile_rows=8, num_shards=2)
    loss2 = jax.block_until_ready(loss2)
    ref2 = jnp.mean((x2 - t2) ** 2)
    assert jnp.allclose(loss2, ref2, rtol=1e-6, atol=1e-6), (loss2, ref2)

    print("KERNEL_OK")
</pallas_src>

<mosaic_0001>
module attributes {stable_mosaic.version = 11 : i64} {
  func.func @_mse_partial_kernel(%arg0: i32, %arg1: i32, %arg2: memref<16x128xf32, #tpu.memory_space<vmem>>, %arg3: memref<16x128xf32, #tpu.memory_space<vmem>>, %arg4: memref<1x8x128xf32, #tpu.memory_space<vmem>>, %arg5: memref<8x128xf32, #tpu.memory_space<vmem>>) attributes {dimension_semantics = [#tpu.dimension_semantics<parallel>, #tpu.dimension_semantics<arbitrary>], iteration_bounds = array<i64: 1, 1>, scalar_prefetch = 0 : i64, scratch_operands = 1 : i64, tpu.core_type = #tpu.core_type<tc>, window_params = [{transform_indices = @transform_0, window_bounds = array<i64: 16, 128>}, {transform_indices = @transform_1, window_bounds = array<i64: 16, 128>}, {transform_indices = @transform_2, window_bounds = array<i64: 1, 8, 128>}]} {
    %c0_i32 = arith.constant 0 : i32
    %0 = arith.cmpi eq, %arg1, %c0_i32 : i32
    %1 = arith.extui %0 : i1 to i32
    %c0_i32_0 = arith.constant 0 : i32
    %2 = arith.cmpi ne, %1, %c0_i32_0 : i32
    scf.if %2 {
      %cst_10 = arith.constant 0.000000e+00 : f32
      %15 = vector.broadcast %cst_10 : f32 to vector<8x128xf32>
      %c0_11 = arith.constant 0 : index
      %c0_12 = arith.constant 0 : index
      %16 = vector.load %arg5[%c0_11, %c0_12] : memref<8x128xf32, #tpu.memory_space<vmem>>, vector<8x128xf32>
      tpu.vector_store %arg5[%c0_11, %c0_12], %15 {strides = array<i32>} : memref<8x128xf32, #tpu.memory_space<vmem>>, vector<8x128xf32>,
    } else {
    }
    %c0 = arith.constant 0 : index
    %c0_1 = arith.constant 0 : index
    %3 = vector.load %arg2[%c0, %c0_1] : memref<16x128xf32, #tpu.memory_space<vmem>>, vector<16x128xf32>
    %c0_2 = arith.constant 0 : index
    %c0_3 = arith.constant 0 : index
    %4 = vector.load %arg3[%c0_2, %c0_3] : memref<16x128xf32, #tpu.memory_space<vmem>>, vector<16x128xf32>
    %5 = arith.subf %3, %4 : vector<16x128xf32>
    %6 = arith.mulf %5, %5 : vector<16x128xf32>
    %c0_4 = arith.constant 0 : index
    %c0_5 = arith.constant 0 : index
    %7 = vector.load %arg5[%c0_4, %c0_5] : memref<8x128xf32, #tpu.memory_space<vmem>>, vector<8x128xf32>
    %8 = vector.shape_cast %6 : vector<16x128xf32> to vector<2x8x128xf32>
    %cst = arith.constant dense<0.000000e+00> : vector<8x128xf32>
    %9 = vector.multi_reduction <add>, %8, %cst [0] : vector<2x8x128xf32> to vector<8x128xf32>
    %10 = arith.addf %7, %9 : vector<8x128xf32>
    %c0_6 = arith.constant 0 : index
    %c0_7 = arith.constant 0 : index
    %11 = vector.load %arg5[%c0_6, %c0_7] : memref<8x128xf32, #tpu.memory_space<vmem>>, vector<8x128xf32>
    tpu.vector_store %arg5[%c0_6, %c0_7], %10 {strides = array<i32>} : memref<8x128xf32, #tpu.memory_space<vmem>>, vector<8x128xf32>,
    %c0_i32_8 = arith.constant 0 : i32
    %12 = arith.cmpi eq, %arg1, %c0_i32_8 : i32
    %13 = arith.extui %12 : i1 to i32
    %c0_i32_9 = arith.constant 0 : i32
    %14 = arith.cmpi ne, %13, %c0_i32_9 : i32
    scf.if %14 {
      %c0_10 = arith.constant 0 : index
      %c0_11 = arith.constant 0 : index
      %15 = vector.load %arg5[%c0_10, %c0_11] : memref<8x128xf32, #tpu.memory_space<vmem>>, vector<8x128xf32>
      %c0_12 = arith.constant 0 : index
      %c0_13 = arith.constant 0 : index
      %c0_14 = arith.constant 0 : index
      %16 = vector.load %arg4[%c0_12, %c0_13, %c0_14] : memref<1x8x128xf32, #tpu.memory_space<vmem>>, vector<1x8x128xf32>
      %17 = vector.shape_cast %16 : vector<1x8x128xf32> to vector<8x128xf32>
      %18 = vector.shape_cast %15 : vector<8x128xf32> to vector<1x8x128xf32>
      tpu.vector_store %arg4[%c0_12, %c0_13, %c0_14], %18 {strides = array<i32>} : memref<1x8x128xf32, #tpu.memory_space<vmem>>, vector<1x8x128xf32>,
    } else {
    }
    return
  }
  func.func @transform_0(%arg0: i32, %arg1: i32) -> (i32, i32) {
    %c1_i32 = arith.constant 1 : i32
    %0 = arith.muli %arg0, %c1_i32 : i32
    %1 = arith.addi %0, %arg1 : i32
    %c0_i32 = arith.constant 0 : i32
    %2 = arith.minsi %1, %c0_i32 : i32
    %c0_i32_0 = arith.constant 0 : i32
    %c0_i32_1 = arith.constant 0 : i32
    return %2, %c0_i32_0 : i32, i32
  }
  func.func @transform_1(%arg0: i32, %arg1: i32) -> (i32, i32) {
    %c1_i32 = arith.constant 1 : i32
    %0 = arith.muli %arg0, %c1_i32 : i32
    %1 = arith.addi %0, %arg1 : i32
    %c0_i32 = arith.constant 0 : i32
    %2 = arith.minsi %1, %c0_i32 : i32
    %c0_i32_0 = arith.constant 0 : i32
    %c0_i32_1 = arith.constant 0 : i32
    return %2, %c0_i32_0 : i32, i32
  }
  func.func @transform_2(%arg0: i32, %arg1: i32) -> (i32, i32, i32) {
    %c0_i32 = arith.constant 0 : i32
    %c0_i32_0 = arith.constant 0 : i32
    %c0_i32_1 = arith.constant 0 : i32
    return %arg0, %c0_i32, %c0_i32_0 : i32, i32, i32
  }
}

</mosaic_0001>

<llo_original>
// kernel: tpu_custom_call.1
$region0: #{tpu_custom_call.1}
  #allocation0 [shape = 'u32[]', space=smem, size = 0x4, offset = 0x4, fixed_abs, tag = 'smem constant byte address 0x4 - core index']
  #allocation1 [shape = 'u32[144,128]{1,0:T(1,128)}', space=vmem, size = 0x12000, scoped, tag = 'internal scratch']
  #allocation2 [shape = 'f32[8,128]{1,0:T(8,128)}', space=vmem, size = 0x1000, scoped, tag = 'scratch operand']
  %s0 = inlined_call_operand.hbm [shape: f32[16,128], index: 0, kind: input, shape index: {}]
  %s1 = inlined_call_operand.hbm [shape: f32[16,128], index: 1, kind: input, shape index: {}]
  %s2 = inlined_call_operand.hbm [shape: f32[1,8,128], index: 2, kind: output, shape index: {}]
  %s3 = sld [smem:[#allocation0]]
  $region34: #{tpu_custom_call.1} parent=0
    _
  %s5 = ssub.s32 1, %s3
  %s6 = scalar_select 0, %s5, %s3
  $region1: #{tpu_custom_call.1} parent=0
    #allocation3 [shape = 'u8[8192]{0}', space=vmem, size = 0x2000, scoped, tag = 'input window, operand 0, single buffered']
    #allocation4 [shape = 's32[1]{0}', space=sflag, size = 0x4, scoped, tag = 'scoped memory for tpu_custom_call.1']
    #allocation5 [shape = 's32[1]{0}', space=sflag, size = 0x4, scoped, tag = 'scoped memory for tpu_custom_call.1']
    #allocation6 [shape = 'u8[8192]{0}', space=vmem, size = 0x2000, scoped, tag = 'input window, operand 1, single buffered']
    #allocation7 [shape = 's32[1]{0}', space=sflag, size = 0x4, scoped, tag = 'scoped memory for tpu_custom_call.1']
    #allocation8 [shape = 'u8[4096]{0}', space=vmem, size = 0x1000, scoped, tag = 'output window, operand 0, single buffered']
    %7 = vsyncpa [#allocation4], 0
    %8 = vsyncpa [#allocation7], 0
    %9 = vsyncpa [#allocation5], 0
    // Predicated region
    $region2: #{tpu_custom_call.1} parent=1 // pred_check
      _
    $region3: #{tpu_custom_call.1} parent=1 // pred_check_branch
      %11 = sbr.rel (0) target = $region5
    $region4: #{tpu_custom_call.1} parent=1 // pred_region
      %s12 = sadd.s32 0, 0
      %p13 = scmp.lt.s32.totalorder %s12, 0
      %s14 = scalar_select %p13, %s12, 0
      %s15 = smul.u32 2, %s14
      %s17 = ssub.s32 256, 256
      %18 = vsyncadd [#allocation4], %s17
      %s19 = smul.addr %s15, 128
      %s20 = scalar_lea.hbm %s0, %s19
      %s21 = sshll.u32 [#allocation3], 4
      %s22 = int_to_ptr.vmem [resolvable:$true] %s21
      %27 = dma.hbm_to_vmem [thread:$0]  %s20, 256, %s22, [#allocation4], 128, 128, 8
    $region5: #{tpu_custom_call.1} parent=1 // pred_fallthru
      _
    // Predicated region
    $region6: #{tpu_custom_call.1} parent=1 // pred_check
      _
    $region7: #{tpu_custom_call.1} parent=1 // pred_check_branch
      %29 = sbr.rel (0) target = $region9
    $region8: #{tpu_custom_call.1} parent=1 // pred_region
      %s30 = sadd.s32 0, 0
      %p31 = scmp.lt.s32.totalorder %s30, 0
      %s32 = scalar_select %p31, %s30, 0
      %s33 = smul.u32 2, %s32
      %s35 = ssub.s32 256, 256
      %36 = vsyncadd [#allocation7], %s35
      %s37 = smul.addr %s33, 128
      %s38 = scalar_lea.hbm %s1, %s37
      %s39 = sshll.u32 [#allocation6], 4
      %s40 = int_to_ptr.vmem [resolvable:$true] %s39
      %45 = dma.hbm_to_vmem [thread:$0]  %s38, 256, %s40, [#allocation7], 128, 128, 8
    $region9: #{tpu_custom_call.1} parent=1 // pred_fallthru
      _
    // Predicated region
    $region10: #{tpu_custom_call.1} parent=1 // pred_check
      _
    $region11: #{tpu_custom_call.1} parent=1 // pred_check_branch
      %47 = sbr.rel (0) target = $region13
    $region12: #{tpu_custom_call.1} parent=1 // pred_region
      %48 = dma.done [#allocation4], 256
    $region13: #{tpu_custom_call.1} parent=1 // pred_fallthru
      _
    // Predicated region
    $region14: #{tpu_custom_call.1} parent=1 // pred_check
      _
    $region15: #{tpu_custom_call.1} parent=1 // pred_check_branch
      %50 = sbr.rel (0) target = $region17
    $region16: #{tpu_custom_call.1} parent=1 // pred_region
      %51 = dma.done [#allocation7], 256
    $region17: #{tpu_custom_call.1} parent=1 // pred_fallthru
      _
    %s52 = sadd.s32 0, 0
    %p53 = scmp.lt.s32.totalorder %s52, 0
    %s54 = scalar_select %p53, %s52, 0
    %s55 = smul.u32 2, %s54
    %s56 = sadd.s32 0, 0
    %p57 = scmp.lt.s32.totalorder %s56, 0
    %s58 = scalar_select %p57, %s56, 0
    %s59 = smul.u32 2, %s58
    %p60 = scmp.eq.s32.totalorder 0, 0
    // Predicated region
    $region18: #{tpu_custom_call.1} parent=1 // pred_check
      %p61 = pneg %p60
    $region19: #{tpu_custom_call.1} parent=1 // pred_check_branch
      %63 = sbr.rel (%p61) target = $region21
    $region20: #{tpu_custom_call.1} parent=1 // pred_region
      %64 = vst [vmem:[#allocation2] sm:$0xff] 0.0
    $region21: #{tpu_custom_call.1} parent=1 // pred_fallthru
      _
    %v65 = vld [vmem:[#allocation3] sm:$0xff]
    %v66 = vld [vmem:[#allocation3 + $0x8] sm:$0xff]
    %v67 = vld [vmem:[#allocation6] sm:$0xff]
    %v68 = vld [vmem:[#allocation6 + $0x8] sm:$0xff]
    %v69 = vsub.f32 %v65, %v67
    %v70 = vsub.f32 %v66, %v68
    %v71 = vmul.f32 %v69, %v69
    %v72 = vmul.f32 %v70, %v70
    %v73 = vld [vmem:[#allocation2] sm:$0xff]
    %v74 = vadd.f32 %v71, %v72
    %v75 = vadd.f32 %v73, %v74
    %76 = vst [vmem:[#allocation2] sm:$0xff] %v75
    // Predicated region
    $region22: #{tpu_custom_call.1} parent=1 // pred_check
      %p77 = pneg %p60
    $region23: #{tpu_custom_call.1} parent=1 // pred_check_branch
      %79 = sbr.rel (%p77) target = $region25
    $region24: #{tpu_custom_call.1} parent=1 // pred_region
      %v80 = vld [vmem:[#allocation2] sm:$0xff]
      %81 = vst [vmem:[#allocation8] sm:$0xff] %v80
    $region25: #{tpu_custom_call.1} parent=1 // pred_fallthru
      _
    // Predicated region
    $region26: #{tpu_custom_call.1} parent=1 // pred_check
      _
    $region27: #{tpu_custom_call.1} parent=1 // pred_check_branch
      %83 = sbr.rel (0) target = $region29
    $region28: #{tpu_custom_call.1} parent=1 // pred_region
      %s85 = ssub.s32 128, 128
      %86 = vsyncadd [#allocation5], %s85
      %s88 = sshll.u32 [#allocation8], 4
      %s89 = int_to_ptr.vmem [resolvable:$true] %s88
      %91 = dma.vmem_to_hbm [thread:$0]  %s89, 128, %s2, [#allocation5]
    $region29: #{tpu_custom_call.1} parent=1 // pred_fallthru
      _
    // Predicated region
    $region30: #{tpu_custom_call.1} parent=1 // pred_check
      _
    $region31: #{tpu_custom_call.1} parent=1 // pred_check_branch
      %93 = sbr.rel (0) target = $region33
    $region32: #{tpu_custom_call.1} parent=1 // pred_region
      %94 = dma.done [#allocation5], 128
    $region33: #{tpu_custom_call.1} parent=1 // pred_fallthru
      _
    %95 = vsyncpa [#allocation4], 1
    %96 = vsyncpa [#allocation7], 1
    %97 = vsyncpa [#allocation5], 1

</llo_original>
